<compile_context>
chip_gen: v7x
topology: tpu7x:2x2x1
jax: 0.10.0
libtpu: 0.0.40
codegen_flags: <defaults>
</compile_context>

<pallas_src>
import functools

import jax
import jax.numpy as jnp
from jax.experimental import pallas as pl
from jax.experimental.pallas import tpu as pltpu

NEG_SLOPE = 0.01          # F.leaky_relu default negative_slope


def _round_up(n, m):
    return ((n + m - 1) // m) * m


def _leaky_relu(x):
    # valid for 0 < NEG_SLOPE < 1: max(x, a*x) == leaky_relu(x)
    return jnp.maximum(x, NEG_SLOPE * x)


def clusterer_kernel(x_ref, w1_ref, b1_ref, w2_ref, b2_ref, w3_ref, b3_ref,
                     o_ref, *, compute_dtype):
    cd = compute_dtype
    x = x_ref[...].astype(cd)

    # Layer 1: Linear + leaky_relu (MXU matmul, f32 accumulation, f32 bias)
    h1 = jnp.dot(x, w1_ref[...], preferred_element_type=jnp.float32) + b1_ref[...]
    h1 = _leaky_relu(h1)

    # Layer 2: Linear + leaky_relu
    h2 = jnp.dot(h1.astype(cd), w2_ref[...],
                 preferred_element_type=jnp.float32) + b2_ref[...]
    h2 = _leaky_relu(h2)

    # Layer 3: Linear + softmax over the (narrow) class dim.
    logits = jnp.dot(h2.astype(cd), w3_ref[...],
                     preferred_element_type=jnp.float32) + b3_ref[...]
    m = jnp.max(logits, axis=-1, keepdims=True)
    e = jnp.exp(logits - m)
    denom = jnp.sum(e, axis=-1, keepdims=True)
    # exact divide: rows sum to 1 to f32 precision (approx reciprocal does not)
    o_ref[...] = (e / denom).astype(o_ref.dtype)


def clusterer_forward(x, params, *, tile_b=1024, compute_dtype=jnp.bfloat16):
    """x: [B, input_size] float32 (or bf16). params: pre-transposed weights/biases.

    tile_b: max batch rows per grid step. Large tiles amortize the ~0.35us
    per-step overhead; VMEM use stays tiny (weights resident, activations
    tile_b x 128 f32)."""
    w1, b1, w2, b2, w3, b3 = (
        params["w1"], params["b1"], params["w2"],
        params["b2"], params["w3"], params["b3"],
    )
    B, in_size = x.shape
    hid = w1.shape[1]
    out_size = w3.shape[1]

    # One-time pre-cast of the matmul operands (biases stay f32 — they are
    # added after the f32-accumulating dot).
    w1 = w1.astype(compute_dtype)
    w2 = w2.astype(compute_dtype)
    w3 = w3.astype(compute_dtype)

    # Batch tiling: sublane-aligned tile; also cap at ~B/2 so the parallel
    # grid axis has >= 2 steps whenever possible (v7x has 2 TensorCores).
    tile_b = max(8, min(tile_b, _round_up(pl.cdiv(B, 2), 8)))
    b_pad = _round_up(B, tile_b)
    if b_pad != B:
        x = jnp.pad(x, ((0, b_pad - B), (0, 0)))

    grid = (b_pad // tile_b,)

    def const_spec(shape):
        # weights/biases: same block every grid step -> stay resident in VMEM
        return pl.BlockSpec(shape, lambda i: (0, 0))

    kernel = functools.partial(clusterer_kernel, compute_dtype=compute_dtype)

    out = pl.pallas_call(
        kernel,
        out_shape=jax.ShapeDtypeStruct((b_pad, out_size), jnp.float32),
        grid=grid,
        in_specs=[
            pl.BlockSpec((tile_b, in_size), lambda i: (i, 0)),      # x tile
            const_spec((in_size, hid)),  const_spec((1, hid)),      # w1, b1
            const_spec((hid, hid)),      const_spec((1, hid)),      # w2, b2
            const_spec((hid, out_size)), const_spec((1, out_size)),  # w3, b3
        ],
        # Narrow output block: last dim equals the full array dim (legal) ->
        # only 4*out_size bytes/row written back to HBM instead of 512.
        out_specs=pl.BlockSpec((tile_b, out_size), lambda i: (i, 0)),
        compiler_params=pltpu.CompilerParams(
            # batch grid axis is independent -> shard across v7x's 2 TCs
            dimension_semantics=("parallel",),
        ),
    )(x, w1, b1, w2, b2, w3, b3)

    # strip batch padding
    return out[:B]


def init_params(key, input_size, hidden_size, output_size):
    """Deterministic synthetic init mirroring nn.Linear shapes.
    nn.Linear(in, out) has weight [out, in]; we store it transposed as [in, out]."""
    ks = jax.random.split(key, 6)

    def lin(kw, kb, fan_in, fan_out):
        bound = 1.0 / jnp.sqrt(fan_in)
        w = jax.random.uniform(kw, (fan_in, fan_out), jnp.float32, -bound, bound)
        b = jax.random.uniform(kb, (1, fan_out), jnp.float32, -bound, bound)
        return w, b

    w1, b1 = lin(ks[0], ks[1], input_size, hidden_size)
    w2, b2 = lin(ks[2], ks[3], hidden_size, hidden_size)
    w3, b3 = lin(ks[4], ks[5], hidden_size, output_size)
    return {"w1": w1, "b1": b1, "w2": w2, "b2": b2, "w3": w3, "b3": b3}


def reference_forward(x, params):
    """Pure-JAX f32 reference for correctness checking."""
    h = x @ params["w1"] + params["b1"]
    h = jnp.where(h > 0, h, NEG_SLOPE * h)
    h = h @ params["w2"] + params["b2"]
    h = jnp.where(h > 0, h, NEG_SLOPE * h)
    logits = h @ params["w3"] + params["b3"]
    return jax.nn.softmax(logits, axis=-1)


if __name__ == "__main__":
    key = jax.random.PRNGKey(0)
    k_x, k_p = jax.random.split(key)

    batch = 8
    input_size = 32
    hidden_size = 128
    output_size = 16

    x = jax.random.normal(k_x, (batch, input_size), dtype=jnp.float32)
    params = init_params(k_p, input_size, hidden_size, output_size)
    ref = reference_forward(x, params)

    # f32 compute path: tight check against the reference.
    out_f32 = jax.block_until_ready(
        clusterer_forward(x, params, compute_dtype=jnp.float32))
    assert out_f32.shape == (batch, output_size)
    assert jnp.allclose(out_f32, ref, atol=2e-3, rtol=2e-3), "f32 path mismatch vs reference"
    assert jnp.allclose(jnp.sum(out_f32, axis=-1), 1.0, atol=1e-4), "softmax rows must sum to 1"

    # Perf-default path (bf16 MXU operands, f32 accumulation): looser elementwise
    # tolerance vs the f32 reference, but normalization is still exact.
    out_bf16 = jax.block_until_ready(clusterer_forward(x, params))
    assert out_bf16.shape == (batch, output_size)
    assert jnp.allclose(out_bf16, ref, atol=1e-2, rtol=1e-2), "bf16 path mismatch vs reference"
    assert jnp.allclose(jnp.sum(out_bf16, axis=-1), 1.0, atol=1e-4), "softmax rows must sum to 1"

    print("KERNEL_OK")
</pallas_src>

<mosaic_0001>
module attributes {stable_mosaic.version = 11 : i64} {
  func.func @clusterer_kernel(%arg0: i32, %arg1: memref<8x32xf32, #tpu.memory_space<vmem>>, %arg2: memref<32x128xf32, #tpu.memory_space<vmem>>, %arg3: memref<1x128xf32, #tpu.memory_space<vmem>>, %arg4: memref<128x128xf32, #tpu.memory_space<vmem>>, %arg5: memref<1x128xf32, #tpu.memory_space<vmem>>, %arg6: memref<128x16xf32, #tpu.memory_space<vmem>>, %arg7: memref<1x16xf32, #tpu.memory_space<vmem>>, %arg8: memref<8x16xf32, #tpu.memory_space<vmem>>) attributes {dimension_semantics = [#tpu.dimension_semantics<parallel>], iteration_bounds = array<i64: 1>, scalar_prefetch = 0 : i64, scratch_operands = 0 : i64, tpu.core_type = #tpu.core_type<tc>, window_params = [{transform_indices = @transform_0, window_bounds = array<i64: 8, 32>}, {pipeline_mode = #tpu.pipeline_mode<synchronous>, transform_indices = @transform_1, window_bounds = array<i64: 32, 128>}, {pipeline_mode = #tpu.pipeline_mode<synchronous>, transform_indices = @transform_2, window_bounds = array<i64: 1, 128>}, {pipeline_mode = #tpu.pipeline_mode<synchronous>, transform_indices = @transform_3, window_bounds = array<i64: 128, 128>}, {pipeline_mode = #tpu.pipeline_mode<synchronous>, transform_indices = @transform_4, window_bounds = array<i64: 1, 128>}, {pipeline_mode = #tpu.pipeline_mode<synchronous>, transform_indices = @transform_5, window_bounds = array<i64: 128, 16>}, {pipeline_mode = #tpu.pipeline_mode<synchronous>, transform_indices = @transform_6, window_bounds = array<i64: 1, 16>}, {transform_indices = @transform_7, window_bounds = array<i64: 8, 16>}]} {
    %c0 = arith.constant 0 : index
    %c0_0 = arith.constant 0 : index
    %0 = vector.load %arg1[%c0, %c0_0] : memref<8x32xf32, #tpu.memory_space<vmem>>, vector<8x32xf32>
    %c0_1 = arith.constant 0 : index
    %c0_2 = arith.constant 0 : index
    %1 = vector.load %arg2[%c0_1, %c0_2] : memref<32x128xf32, #tpu.memory_space<vmem>>, vector<32x128xf32>
    %cst = arith.constant dense<0.000000e+00> : vector<8x128xf32>
    %2 = tpu.matmul %0, %1, %cst {dimension_numbers = #tpu.dot_dimension_numbers<[1], [0], [0], [1], [0, 0, 1, 1], [], []>} : vector<8x32xf32>, vector<32x128xf32>, vector<8x128xf32> -> vector<8x128xf32>
    %c0_3 = arith.constant 0 : index
    %c0_4 = arith.constant 0 : index
    %3 = vector.load %arg3[%c0_3, %c0_4] : memref<1x128xf32, #tpu.memory_space<vmem>>, vector<1x128xf32>
    %4 = vector.broadcast %3 : vector<1x128xf32> to vector<8x128xf32>
    %5 = arith.addf %2, %4 : vector<8x128xf32>
    %cst_5 = arith.constant 0.00999999977 : f32
    %6 = vector.broadcast %cst_5 : f32 to vector<8x128xf32>
    %7 = arith.mulf %6, %5 : vector<8x128xf32>
    %8 = arith.maximumf %5, %7 : vector<8x128xf32>
    %c0_6 = arith.constant 0 : index
    %c0_7 = arith.constant 0 : index
    %9 = vector.load %arg4[%c0_6, %c0_7] : memref<128x128xf32, #tpu.memory_space<vmem>>, vector<128x128xf32>
    %cst_8 = arith.constant dense<0.000000e+00> : vector<8x128xf32>
    %10 = tpu.matmul %8, %9, %cst_8 {dimension_numbers = #tpu.dot_dimension_numbers<[1], [0], [0], [1], [0, 0, 1, 1], [], []>} : vector<8x128xf32>, vector<128x128xf32>, vector<8x128xf32> -> vector<8x128xf32>
    %c0_9 = arith.constant 0 : index
    %c0_10 = arith.constant 0 : index
    %11 = vector.load %arg5[%c0_9, %c0_10] : memref<1x128xf32, #tpu.memory_space<vmem>>, vector<1x128xf32>
    %12 = vector.broadcast %11 : vector<1x128xf32> to vector<8x128xf32>
    %13 = arith.addf %10, %12 : vector<8x128xf32>
    %cst_11 = arith.constant 0.00999999977 : f32
    %14 = vector.broadcast %cst_11 : f32 to vector<8x128xf32>
    %15 = arith.mulf %14, %13 : vector<8x128xf32>
    %16 = arith.maximumf %13, %15 : vector<8x128xf32>
    %c0_12 = arith.constant 0 : index
    %c0_13 = arith.constant 0 : index
    %17 = vector.load %arg6[%c0_12, %c0_13] : memref<128x16xf32, #tpu.memory_space<vmem>>, vector<128x16xf32>
    %cst_14 = arith.constant dense<0.000000e+00> : vector<8x16xf32>
    %18 = tpu.matmul %16, %17, %cst_14 {dimension_numbers = #tpu.dot_dimension_numbers<[1], [0], [0], [1], [0, 0, 1, 1], [], []>} : vector<8x128xf32>, vector<128x16xf32>, vector<8x16xf32> -> vector<8x16xf32>
    %c0_15 = arith.constant 0 : index
    %c0_16 = arith.constant 0 : index
    %19 = vector.load %arg7[%c0_15, %c0_16] : memref<1x16xf32, #tpu.memory_space<vmem>>, vector<1x16xf32>
    %20 = vector.broadcast %19 : vector<1x16xf32> to vector<8x16xf32>
    %21 = arith.addf %18, %20 : vector<8x16xf32>
    %cst_17 = arith.constant dense<0xFF800000> : vector<8xf32>
    %22 = vector.multi_reduction <maximumf>, %21, %cst_17 [1] : vector<8x16xf32> to vector<8xf32>
    %23 = vector.shape_cast %22 : vector<8xf32> to vector<8x1xf32>
    %24 = vector.broadcast %23 : vector<8x1xf32> to vector<8x16xf32>
    %25 = arith.subf %21, %24 : vector<8x16xf32>
    %26 = math.exp %25 : vector<8x16xf32>
    %cst_18 = arith.constant dense<0.000000e+00> : vector<8xf32>
    %27 = vector.multi_reduction <add>, %26, %cst_18 [1] : vector<8x16xf32> to vector<8xf32>
    %28 = vector.shape_cast %27 : vector<8xf32> to vector<8x1xf32>
    %29 = vector.broadcast %28 : vector<8x1xf32> to vector<8x16xf32>
    %30 = arith.divf %26, %29 : vector<8x16xf32>
    %c0_19 = arith.constant 0 : index
    %c0_20 = arith.constant 0 : index
    %31 = vector.load %arg8[%c0_19, %c0_20] : memref<8x16xf32, #tpu.memory_space<vmem>>, vector<8x16xf32>
    tpu.vector_store %arg8[%c0_19, %c0_20], %30 {strides = array<i32>} : memref<8x16xf32, #tpu.memory_space<vmem>>, vector<8x16xf32>,
    return
  }
  func.func @transform_0(%arg0: i32) -> (i32, i32) {
    %c0_i32 = arith.constant 0 : i32
    %c0_i32_0 = arith.constant 0 : i32
    return %arg0, %c0_i32 : i32, i32
  }
  func.func @transform_1(%arg0: i32) -> (i32, i32) {
    %c0_i32 = arith.constant 0 : i32
    %c0_i32_0 = arith.constant 0 : i32
    %c0_i32_1 = arith.constant 0 : i32
    return %c0_i32, %c0_i32_0 : i32, i32
  }
  func.func @transform_2(%arg0: i32) -> (i32, i32) {
    %c0_i32 = arith.constant 0 : i32
    %c0_i32_0 = arith.constant 0 : i32
    %c0_i32_1 = arith.constant 0 : i32
    return %c0_i32, %c0_i32_0 : i32, i32
  }
  func.func @transform_3(%arg0: i32) -> (i32, i32) {
    %c0_i32 = arith.constant 0 : i32
    %c0_i32_0 = arith.constant 0 : i32
    %c0_i32_1 = arith.constant 0 : i32
    return %c0_i32, %c0_i32_0 : i32, i32
  }
  func.func @transform_4(%arg0: i32) -> (i32, i32) {
    %c0_i32 = arith.constant 0 : i32
    %c0_i32_0 = arith.constant 0 : i32
    %c0_i32_1 = arith.constant 0 : i32
    return %c0_i32, %c0_i32_0 : i32, i32
  }
  func.func @transform_5(%arg0: i32) -> (i32, i32) {
    %c0_i32 = arith.constant 0 : i32
    %c0_i32_0 = arith.constant 0 : i32
    %c0_i32_1 = arith.constant 0 : i32
    return %c0_i32, %c0_i32_0 : i32, i32
  }
  func.func @transform_6(%arg0: i32) -> (i32, i32) {
    %c0_i32 = arith.constant 0 : i32
    %c0_i32_0 = arith.constant 0 : i32
    %c0_i32_1 = arith.constant 0 : i32
    return %c0_i32, %c0_i32_0 : i32, i32
  }
  func.func @transform_7(%arg0: i32) -> (i32, i32) {
    %c0_i32 = arith.constant 0 : i32
    %c0_i32_0 = arith.constant 0 : i32
    return %arg0, %c0_i32 : i32, i32
  }
}

</mosaic_0001>

<llo_original>
// kernel: tpu_custom_call.1
$region0: #{tpu_custom_call.1}
  #allocation0 [shape = 'u32[]', space=smem, size = 0x4, offset = 0x4, fixed_abs, tag = 'smem constant byte address 0x4 - core index']
  #allocation1 [shape = 'u32[144,128]{1,0:T(1,128)}', space=vmem, size = 0x12000, scoped, tag = 'internal scratch']
  %s0 = inlined_call_operand.vmem [shape: f32[8,32], index: 0, kind: input, shape index: {}]
  %s1 = inlined_call_operand.hbm [shape: f32[32,128], index: 1, kind: input, shape index: {}]
  %s2 = inlined_call_operand.vmem [shape: f32[1,128], index: 2, kind: input, shape index: {}]
  %s3 = inlined_call_operand.vmem [shape: f32[128,128], index: 3, kind: input, shape index: {}]
  %s4 = inlined_call_operand.vmem [shape: f32[1,128], index: 4, kind: input, shape index: {}]
  %s5 = inlined_call_operand.vmem [shape: f32[128,16], index: 5, kind: input, shape index: {}]
  %s6 = inlined_call_operand.vmem [shape: f32[1,16], index: 6, kind: input, shape index: {}]
  %s7 = inlined_call_operand.hbm [shape: f32[8,16], index: 7, kind: output, shape index: {}]
  %s8 = sld [smem:[#allocation0]]
  $region42: #{tpu_custom_call.1} parent=0
    _
  %s10 = ssub.s32 1, %s8
  %s11 = scalar_select 0, %s10, %s8
  $region1: #{tpu_custom_call.1} parent=0
    #allocation2 [shape = 'u8[16384]{0}', space=vmem, size = 0x4000, scoped, tag = 'input window, operand 1, single buffered']
    #allocation3 [shape = 's32[1]{0}', space=sflag, size = 0x4, scoped, tag = 'scoped memory for tpu_custom_call.1']
    #allocation4 [shape = 's32[1]{0}', space=sflag, size = 0x4, scoped, tag = 'scoped memory for tpu_custom_call.1']
    #allocation5 [shape = 'u8[4096]{0}', space=vmem, size = 0x1000, scoped, tag = 'output window, operand 0, single buffered']
    %12 = vsyncpa [#allocation3], 0
    %13 = vsyncpa [#allocation4], 0
    // Predicated region
    $region2: #{tpu_custom_call.1} parent=1 // pred_check
      _
    $region3: #{tpu_custom_call.1} parent=1 // pred_check_branch
      %15 = sbr.rel (0) target = $region5
    $region4: #{tpu_custom_call.1} parent=1 // pred_region
      _
    $region5: #{tpu_custom_call.1} parent=1 // pred_fallthru
      _
    // Predicated region
    $region6: #{tpu_custom_call.1} parent=1 // pred_check
      _
    $region7: #{tpu_custom_call.1} parent=1 // pred_check_branch
      %17 = sbr.rel (0) target = $region9
    $region8: #{tpu_custom_call.1} parent=1 // pred_region
      %s19 = ssub.s32 512, 512
      %20 = vsyncadd [#allocation3], %s19
      %s21 = sshll.u32 [#allocation2], 4
      %s22 = int_to_ptr.vmem [resolvable:$true] %s21
      %27 = dma.hbm_to_vmem [thread:$0]  %s1, 512, %s22, [#allocation3], 128, 128, 8
    $region9: #{tpu_custom_call.1} parent=1 // pred_fallthru
      _
    // Predicated region
    $region10: #{tpu_custom_call.1} parent=1 // pred_check
      _
    $region11: #{tpu_custom_call.1} parent=1 // pred_check_branch
      %29 = sbr.rel (0) target = $region13
    $region12: #{tpu_custom_call.1} parent=1 // pred_region
      _
    $region13: #{tpu_custom_call.1} parent=1 // pred_fallthru
      _
    // Predicated region
    $region14: #{tpu_custom_call.1} parent=1 // pred_check
      _
    $region15: #{tpu_custom_call.1} parent=1 // pred_check_branch
      %31 = sbr.rel (0) target = $region17
    $region16: #{tpu_custom_call.1} parent=1 // pred_region
      _
    $region17: #{tpu_custom_call.1} parent=1 // pred_fallthru
      _
    // Predicated region
    $region18: #{tpu_custom_call.1} parent=1 // pred_check
      _
    $region19: #{tpu_custom_call.1} parent=1 // pred_check_branch
      %33 = sbr.rel (0) target = $region21
    $region20: #{tpu_custom_call.1} parent=1 // pred_region
      _
    $region21: #{tpu_custom_call.1} parent=1 // pred_fallthru
      _
    // Predicated region
    $region22: #{tpu_custom_call.1} parent=1 // pred_check
      _
    $region23: #{tpu_custom_call.1} parent=1 // pred_check_branch
      %35 = sbr.rel (0) target = $region25
    $region24: #{tpu_custom_call.1} parent=1 // pred_region
      _
    $region25: #{tpu_custom_call.1} parent=1 // pred_fallthru
      _
    // Predicated region
    $region26: #{tpu_custom_call.1} parent=1 // pred_check
      _
    $region27: #{tpu_custom_call.1} parent=1 // pred_check_branch
      %37 = sbr.rel (0) target = $region29
    $region28: #{tpu_custom_call.1} parent=1 // pred_region
      _
    $region29: #{tpu_custom_call.1} parent=1 // pred_fallthru
      _
    // Predicated region
    $region30: #{tpu_custom_call.1} parent=1 // pred_check
      _
    $region31: #{tpu_custom_call.1} parent=1 // pred_check_branch
      %39 = sbr.rel (0) target = $region33
    $region32: #{tpu_custom_call.1} parent=1 // pred_region
      %40 = dma.done [#allocation3], 512
    $region33: #{tpu_custom_call.1} parent=1 // pred_fallthru
      _
    %v41 = vld [vmem:[%s0] sm:$0xff]
    %v42 = vld [vmem:[#allocation2] sm:$0xff]
    %v43 = vld [vmem:[#allocation2 + $0x8] sm:$0xff]
    %v44 = vld [vmem:[#allocation2 + $0x10] sm:$0xff]
    %v45 = vld [vmem:[#allocation2 + $0x18] sm:$0xff]
    %v46 = vld [vmem:[%s2] sm:$0x1]
    %v48 = vlaneseq
    %v49 = vshrl.u32 %v48, 7
    %v50 = vsub.s32 0, %v49
    %v51 = vrot.slane %v46, %v50
    %vm53 = vcmask 261120
    %v55 = vsel %vm53, %v41, 0
    %57 = vmatprep.subr.mxu0 0.0
    %58 = vmatpush1.msra.mxu0 %v42
    %59 = vmatprep.subr.mxu0 0.0
    %60 = vmatpush1.msra.mxu0 %v43
    %61 = vmatprep.subr.mxu0 0.0
    %62 = vmatpush1.msra.mxu0 %v44
    %63 = vmatprep.subr.mxu0 0.0
    %64 = vmatpush1.msra.mxu0 %v45
    %65 = vmatprep.subr.mxu0 0.0
    %66 = vmatpush1.msra.mxu0 0.0
    %67 = vmatprep.subr.mxu0 0.0
    %68 = vmatpush1.msra.mxu0 0.0
    %69 = vmatprep.subr.mxu0 0.0
    %70 = vmatpush1.msra.mxu0 0.0
    %71 = vmatprep.subr.mxu0 0.0
    %72 = vmatpush1.msra.mxu0 0.0
    %73 = vmatprep.subr.mxu0 0.0
    %74 = vmatpush1.msra.mxu0 0.0
    %75 = vmatprep.subr.mxu0 0.0
    %76 = vmatpush1.msra.mxu0 0.0
    %77 = vmatprep.subr.mxu0 0.0
    %78 = vmatpush1.msra.mxu0 0.0
    %79 = vmatprep.subr.mxu0 0.0
    %80 = vmatpush1.msra.mxu0 0.0
    %81 = vmatprep.subr.mxu0 0.0
    %82 = vmatpush1.msra.mxu0 0.0
    %83 = vmatprep.subr.mxu0 0.0
    %84 = vmatpush1.msra.mxu0 0.0
    %85 = vmatprep.subr.mxu0 0.0
    %86 = vmatpush1.msra.mxu0 0.0
    %87 = vmatprep.subr.mxu0 0.0
    %88 = vmatpush1.msra.mxu0 0.0
    %89 = vmatprep.subr.mxu0 0.0
    %90 = vmatpush1.msra.mxu0 0.0
    %91 = vmatprep.subr.mxu0 0.0
    %92 = vmatpush1.msra.mxu0 0.0
    %93 = vmatprep.subr.mxu0 0.0
    %94 = vmatpush1.msra.mxu0 0.0
    %95 = vmatprep.subr.mxu0 0.0
    %96 = vmatpush1.msra.mxu0 0.0
    %97 = vmatprep.subr.mxu0 0.0
    %98 = vmatpush1.msra.mxu0 0.0
    %99 = vmatprep.subr.mxu0 0.0
    %100 = vmatpush1.msra.mxu0 0.0
    %101 = vmatprep.subr.mxu0 0.0
    %102 = vmatpush1.msra.mxu0 0.0
    %103 = vmatprep.subr.mxu0 0.0
    %104 = vmatpush1.msra.mxu0 0.0
    %105 = vmatprep.subr.mxu0 0.0
    %106 = vmatpush1.msra.mxu0 0.0
    %107 = vmatprep.subr.mxu0 0.0
    %108 = vmatpush1.msra.mxu0 0.0
    %109 = vmatprep.subr.mxu0 0.0
    %110 = vmatpush1.msra.mxu0 0.0
    %111 = vmatprep.subr.mxu0 0.0
    %112 = vmatpush1.msra.mxu0 0.0
    %113 = vmatprep.subr.mxu0 0.0
    %114 = vmatpush1.msra.mxu0 0.0
    %115 = vmatprep.subr.mxu0 0.0
    %116 = vmatpush1.msra.mxu0 0.0
    %117 = vmatprep.subr.mxu0 0.0
    %118 = vmatpush1.msra.mxu0 0.0
    %119 = vmatprep.subr.mxu0 0.0
    %120 = vmatpush1.msra.mxu0 0.0
    %121 = vmatprep.mubr.f32.mxu0 0.0
    %122 = vmatmul.mubr.f32.gmra.mrb[0].mxu0 %v55
    %v123 = vpop.f32.mrb[0].mxu0
    %v124 = vadd.f32 %v51, %v123
    %v125 = vpop.f32.mrb[0].mxu0
    %126 = vdwg.mxu0
    %v127 = vmul.f32 %v124, 0.01
    %v128 = vmax.f32 %v124, %v127
    %v129 = vld [vmem:[%s3] sm:$0xff]
    %v130 = vld [vmem:[%s3 + $0x8] sm:$0xff]
    %v131 = vld [vmem:[%s3 + $0x10] sm:$0xff]
    %v132 = vld [vmem:[%s3 + $0x18] sm:$0xff]
    %v133 = vld [vmem:[%s3 + $0x20] sm:$0xff]
    %v134 = vld [vmem:[%s3 + $0x28] sm:$0xff]
    %v135 = vld [vmem:[%s3 + $0x30] sm:$0xff]
    %v136 = vld [vmem:[%s3 + $0x38] sm:$0xff]
    %v137 = vld [vmem:[%s3 + $0x40] sm:$0xff]
    %v138 = vld [vmem:[%s3 + $0x48] sm:$0xff]
    %v139 = vld [vmem:[%s3 + $0x50] sm:$0xff]
    %v140 = vld [vmem:[%s3 + $0x58] sm:$0xff]
    %v141 = vld [vmem:[%s3 + $0x60] sm:$0xff]
    %v142 = vld [vmem:[%s3 + $0x68] sm:$0xff]
    %v143 = vld [vmem:[%s3 + $0x70] sm:$0xff]
    %v144 = vld [vmem:[%s3 + $0x78] sm:$0xff]
    %v145 = vld [vmem:[%s4] sm:$0x1]
    %v147 = vlaneseq
    %v148 = vshrl.u32 %v147, 7
    %v149 = vsub.s32 0, %v148
    %v150 = vrot.slane %v145, %v149
    %152 = vmatprep.subr.mxu0 0.0
    %153 = vmatpush1.msra.mxu0 %v129
    %154 = vmatprep.subr.mxu0 0.0
    %155 = vmatpush1.msra.mxu0 %v130
    %156 = vmatprep.subr.mxu0 0.0
    %157 = vmatpush1.msra.mxu0 %v131
    %158 = vmatprep.subr.mxu0 0.0
    %159 = vmatpush1.msra.mxu0 %v132
    %160 = vmatprep.subr.mxu0 0.0
    %161 = vmatpush1.msra.mxu0 %v133
    %162 = vmatprep.subr.mxu0 0.0
    %163 = vmatpush1.msra.mxu0 %v134
    %164 = vmatprep.subr.mxu0 0.0
    %165 = vmatpush1.msra.mxu0 %v135
    %166 = vmatprep.subr.mxu0 0.0
    %167 = vmatpush1.msra.mxu0 %v136
    %168 = vmatprep.subr.mxu0 0.0
    %169 = vmatpush1.msra.mxu0 %v137
    %170 = vmatprep.subr.mxu0 0.0
    %171 = vmatpush1.msra.mxu0 %v138
    %172 = vmatprep.subr.mxu0 0.0
    %173 = vmatpush1.msra.mxu0 %v139
    %174 = vmatprep.subr.mxu0 0.0
    %175 = vmatpush1.msra.mxu0 %v140
    %176 = vmatprep.subr.mxu0 0.0
    %177 = vmatpush1.msra.mxu0 %v141
    %178 = vmatprep.subr.mxu0 0.0
    %179 = vmatpush1.msra.mxu0 %v142
    %180 = vmatprep.subr.mxu0 0.0
    %181 = vmatpush1.msra.mxu0 %v143
    %182 = vmatprep.subr.mxu0 0.0
    %183 = vmatpush1.msra.mxu0 %v144
    %184 = vmatprep.subr.mxu0 0.0
    %185 = vmatpush1.msra.mxu0 0.0
    %186 = vmatprep.subr.mxu0 0.0
    %187 = vmatpush1.msra.mxu0 0.0
    %188 = vmatprep.subr.mxu0 0.0
    %189 = vmatpush1.msra.mxu0 0.0
    %190 = vmatprep.subr.mxu0 0.0
    %191 = vmatpush1.msra.mxu0 0.0
    %192 = vmatprep.subr.mxu0 0.0
    %193 = vmatpush1.msra.mxu0 0.0
    %194 = vmatprep.subr.mxu0 0.0
    %195 = vmatpush1.msra.mxu0 0.0
    %196 = vmatprep.subr.mxu0 0.0
    %197 = vmatpush1.msra.mxu0 0.0
    %198 = vmatprep.subr.mxu0 0.0
    %199 = vmatpush1.msra.mxu0 0.0
    %200 = vmatprep.subr.mxu0 0.0
    %201 = vmatpush1.msra.mxu0 0.0
    %202 = vmatprep.subr.mxu0 0.0
    %203 = vmatpush1.msra.mxu0 0.0
    %204 = vmatprep.subr.mxu0 0.0
    %205 = vmatpush1.msra.mxu0 0.0
    %206 = vmatprep.subr.mxu0 0.0
    %207 = vmatpush1.msra.mxu0 0.0
    %208 = vmatprep.subr.mxu0 0.0
    %209 = vmatpush1.msra.mxu0 0.0
    %210 = vmatprep.subr.mxu0 0.0
    %211 = vmatpush1.msra.mxu0 0.0
    %212 = vmatprep.subr.mxu0 0.0
    %213 = vmatpush1.msra.mxu0 0.0
    %214 = vmatprep.subr.mxu0 0.0
    %215 = vmatpush1.msra.mxu0 0.0
    %216 = vmatprep.mubr.f32.mxu0 0.0
    %217 = vmatmul.mubr.f32.gmra.mrb[0].mxu0 %v128
    %v218 = vpop.f32.mrb[0].mxu0
    %v219 = vadd.f32 %v150, %v218
    %v220 = vpop.f32.mrb[0].mxu0
    %221 = vdwg.mxu0
    %v222 = vmul.f32 %v219, 0.01
    %v223 = vmax.f32 %v219, %v222
    %v224 = vld [vmem:[%s5] sm:$0xff]
    %v225 = vld [vmem:[%s5 + $0x8] sm:$0xff]
    %v226 = vld [vmem:[%s5 + $0x10] sm:$0xff]
    %v227 = vld [vmem:[%s5 + $0x18] sm:$0xff]
    %v228 = vld [vmem:[%s5 + $0x20] sm:$0xff]
    %v229 = vld [vmem:[%s5 + $0x28] sm:$0xff]
    %v230 = vld [vmem:[%s5 + $0x30] sm:$0xff]
    %v231 = vld [vmem:[%s5 + $0x38] sm:$0xff]
    %v232 = vld [vmem:[%s5 + $0x40] sm:$0xff]
    %v233 = vld [vmem:[%s5 + $0x48] sm:$0xff]
    %v234 = vld [vmem:[%s5 + $0x50] sm:$0xff]
    %v235 = vld [vmem:[%s5 + $0x58] sm:$0xff]
    %v236 = vld [vmem:[%s5 + $0x60] sm:$0xff]
    %v237 = vld [vmem:[%s5 + $0x68] sm:$0xff]
    %v238 = vld [vmem:[%s5 + $0x70] sm:$0xff]
    %v239 = vld [vmem:[%s5 + $0x78] sm:$0xff]
    %v240 = vld [vmem:[%s6] sm:$0x1]
    %v242 = vlaneseq
    %v243 = vshrl.u32 %v242, 7
    %v244 = vsub.s32 0, %v243
    %v245 = vrot.slane %v240, %v244
    %247 = vmatprep.subr.mxu0 0.0
    %248 = vmatpush1.msra.mxu0 %v224
    %249 = vmatprep.subr.mxu0 0.0
    %250 = vmatpush1.msra.mxu0 %v225
    %251 = vmatprep.subr.mxu0 0.0
    %252 = vmatpush1.msra.mxu0 %v226
    %253 = vmatprep.subr.mxu0 0.0
    %254 = vmatpush1.msra.mxu0 %v227
    %255 = vmatprep.subr.mxu0 0.0
    %256 = vmatpush1.msra.mxu0 %v228
    %257 = vmatprep.subr.mxu0 0.0
    %258 = vmatpush1.msra.mxu0 %v229
    %259 = vmatprep.subr.mxu0 0.0
    %260 = vmatpush1.msra.mxu0 %v230
    %261 = vmatprep.subr.mxu0 0.0
    %262 = vmatpush1.msra.mxu0 %v231
    %263 = vmatprep.subr.mxu0 0.0
    %264 = vmatpush1.msra.mxu0 %v232
    %265 = vmatprep.subr.mxu0 0.0
    %266 = vmatpush1.msra.mxu0 %v233
    %267 = vmatprep.subr.mxu0 0.0
    %268 = vmatpush1.msra.mxu0 %v234
    %269 = vmatprep.subr.mxu0 0.0
    %270 = vmatpush1.msra.mxu0 %v235
    %271 = vmatprep.subr.mxu0 0.0
    %272 = vmatpush1.msra.mxu0 %v236
    %273 = vmatprep.subr.mxu0 0.0
    %274 = vmatpush1.msra.mxu0 %v237
    %275 = vmatprep.subr.mxu0 0.0
    %276 = vmatpush1.msra.mxu0 %v238
    %277 = vmatprep.subr.mxu0 0.0
    %278 = vmatpush1.msra.mxu0 %v239
    %279 = vmatprep.subr.mxu0 0.0
    %280 = vmatpush1.msra.mxu0 0.0
    %281 = vmatprep.subr.mxu0 0.0
    %282 = vmatpush1.msra.mxu0 0.0
    %283 = vmatprep.subr.mxu0 0.0
    %284 = vmatpush1.msra.mxu0 0.0
    %285 = vmatprep.subr.mxu0 0.0
    %286 = vmatpush1.msra.mxu0 0.0
    %287 = vmatprep.subr.mxu0 0.0
    %288 = vmatpush1.msra.mxu0 0.0
    %289 = vmatprep.subr.mxu0 0.0
    %290 = vmatpush1.msra.mxu0 0.0
    %291 = vmatprep.subr.mxu0 0.0
    %292 = vmatpush1.msra.mxu0 0.0
    %293 = vmatprep.subr.mxu0 0.0
    %294 = vmatpush1.msra.mxu0 0.0
    %295 = vmatprep.subr.mxu0 0.0
    %296 = vmatpush1.msra.mxu0 0.0
    %297 = vmatprep.subr.mxu0 0.0
    %298 = vmatpush1.msra.mxu0 0.0
    %299 = vmatprep.subr.mxu0 0.0
    %300 = vmatpush1.msra.mxu0 0.0
    %301 = vmatprep.subr.mxu0 0.0
    %302 = vmatpush1.msra.mxu0 0.0
    %303 = vmatprep.subr.mxu0 0.0
    %304 = vmatpush1.msra.mxu0 0.0
    %305 = vmatprep.subr.mxu0 0.0
    %306 = vmatpush1.msra.mxu0 0.0
    %307 = vmatprep.subr.mxu0 0.0
    %308 = vmatpush1.msra.mxu0 0.0
    %309 = vmatprep.subr.mxu0 0.0
    %310 = vmatpush1.msra.mxu0 0.0
    %311 = vmatprep.mubr.f32.mxu0 0.0
    %312 = vmatmul.mubr.f32.gmra.mrb[0].mxu0 %v223
    %v313 = vpop.f32.mrb[0].mxu0
    %v314 = vadd.f32 %v245, %v313
    %v315 = vpop.f32.mrb[0].mxu0
    %316 = vdwg.mxu0
    %vm317 = vcmask 130048
    %v318 = vsel %vm317, %v314, -inf
    %319 = vmax.xlane.f32.xlu0 %v318
    %v320 = vpop.xlane.xlu0 %319
    %v321 = vsub.f32 %v314, %v320
    %v322 = vmul.f32 %v321, 1.442695
    %v323 = vpow.pop %v322
    %v324 = vsel %vm317, %v323, 0.0
    %325 = vadd.xlane.f32.xlu0 %v324
    %v326 = vpop.xlane.xlu0 %325
    %v327 = vrcp.pop %v326
    %v328 = vmul.f32 %v323, %v327
    %329 = vst.msk [vmem:[#allocation5] sm:$0xff] %vm317, %v328
    // Predicated region
    $region34: #{tpu_custom_call.1} parent=1 // pred_check
      _
    $region35: #{tpu_custom_call.1} parent=1 // pred_check_branch
      %331 = sbr.rel (0) target = $region37
    $region36: #{tpu_custom_call.1} parent=1 // pred_region
      %s333 = ssub.s32 128, 128
      %334 = vsyncadd [#allocation4], %s333
      %s336 = sshll.u32 [#allocation5], 4
      %s337 = int_to_ptr.vmem [resolvable:$true] %s336
      %339 = dma.vmem_to_hbm [thread:$0]  %s337, 128, %s7, [#allocation4]
    $region37: #{tpu_custom_call.1} parent=1 // pred_fallthru
      _
    // Predicated region
    $region38: #{tpu_custom_call.1} parent=1 // pred_check
      _
    $region39: #{tpu_custom_call.1} parent=1 // pred_check_branch
      %341 = sbr.rel (0) target = $region41
    $region40: #{tpu_custom_call.1} parent=1 // pred_region
      %342 = dma.done [#allocation4], 128
    $region41: #{tpu_custom_call.1} parent=1 // pred_fallthru
      _
    %343 = vsyncpa [#allocation3], 1
    %344 = vsyncpa [#allocation4], 1

</llo_original>
